<compile_context>
chip_gen: v6e
topology: v6e:2x2x1
jax: 0.10.0
libtpu: 0.0.40
codegen_flags: <defaults>
</compile_context>

<pallas_src>
import functools

import jax
import jax.numpy as jnp
from jax import lax
from jax.experimental import pallas as pl
from jax.experimental.pallas import tpu as pltpu


# --------------------------- kernel 1: time mean ----------------------------

def time_mean_kernel(x_ref, mean_ref, acc_ref, *, inv_t):
    """Streams lane-dense X blocks over T and writes the (packed) time-mean."""
    t_idx = pl.program_id(0)

    @pl.when(t_idx == 0)
    def _():
        acc_ref[...] = jnp.zeros_like(acc_ref)

    # zero-padded T rows contribute 0 to the sum
    acc_ref[...] += jnp.sum(x_ref[...].astype(jnp.float32), axis=0)

    @pl.when(t_idx == pl.num_programs(0) - 1)
    def _():
        mean_ref[...] = acc_ref[...] * jnp.float32(inv_t)


# ----------------------- kernel 2: graph construction -----------------------

def dgc_epilogue_kernel(xm_ref, e1_ref, e2_ref, th1_ref, th2_ref, a_ref,
                        out_ref, *, alpha, top_k, n_real):
    tile_n, n_pad = out_ref.shape
    i = pl.program_id(0)
    row0 = pl.multiple_of(i * tile_n, tile_n)

    # --- F.normalize(p=2, dim=1) via rsqrt on the squared norm (EUP) ---
    x_full = xm_ref[...]                                           # [N_pad, D]
    x_full = x_full * lax.rsqrt(
        jnp.maximum(jnp.sum(x_full * x_full, axis=1, keepdims=True),
                    jnp.float32(1e-24)))
    x_rows = xm_ref[pl.ds(row0, tile_n), :]                        # [tile_n, D]
    x_rows = x_rows * lax.rsqrt(
        jnp.maximum(jnp.sum(x_rows * x_rows, axis=1, keepdims=True),
                    jnp.float32(1e-24)))

    # cosine-similarity rows: x_rows @ x_full^T (no materialized transpose).
    # HIGHEST: the top-k threshold is discontinuous in the sim values.
    sim = lax.dot_general(x_rows, x_full, (((1,), (1,)), ((), ())),
                          precision=lax.Precision.HIGHEST,
                          preferred_element_type=jnp.float32)       # [tile_n, N_pad]

    row_ids = lax.broadcasted_iota(jnp.int32, (tile_n, n_pad), 0) + row0
    col_ids = lax.broadcasted_iota(jnp.int32, (tile_n, n_pad), 1)
    neg = jnp.float32(-1e30)
    # one fused select: zero the diagonal, exclude lane-padding columns
    cand = jnp.where(col_ids >= n_real, neg,
                     jnp.where(row_ids == col_ids, jnp.float32(0.0), sim))

    # --- Top-K threshold: carry only the [tile_n, 1] kth value ---
    def body(_, kth):
        return jnp.max(jnp.where(cand < kth, cand, neg), axis=-1, keepdims=True)

    kth = lax.fori_loop(0, top_k, body,
                        jnp.full((tile_n, 1), jnp.inf, dtype=jnp.float32),
                        unroll=True)
    # TODO(synk): exact float ties at the k-th value keep >top_k entries
    # (torch.topk keeps exactly top_k).
    a_base = jnp.where(cand >= kth, cand, jnp.float32(0.0))

    # --- adaptive dependency injection ---
    alpha_f = jnp.float32(alpha)
    # HIGH (bf16_3x) kept here so the in-script f32 reference check holds at
    # 1e-3; these outputs feed tanh, so DEFAULT is viable if parity allows.
    prec = lax.Precision.HIGH
    th1 = th1_ref[...]
    th2 = th2_ref[...]
    m1_full = jnp.tanh(alpha_f * jnp.dot(e1_ref[...], th1, precision=prec,
                                         preferred_element_type=jnp.float32))
    m2_full = jnp.tanh(alpha_f * jnp.dot(e2_ref[...], th2, precision=prec,
                                         preferred_element_type=jnp.float32))
    m1_rows = jnp.tanh(alpha_f * jnp.dot(e1_ref[pl.ds(row0, tile_n), :], th1,
                                         precision=prec,
                                         preferred_element_type=jnp.float32))
    m2_rows = jnp.tanh(alpha_f * jnp.dot(e2_ref[pl.ds(row0, tile_n), :], th2,
                                         precision=prec,
                                         preferred_element_type=jnp.float32))
    # diff rows = M1_rows @ M2^T - M2_rows @ M1^T : two MXU matmuls, no XLU transpose
    p1 = lax.dot_general(m1_rows, m2_full, (((1,), (1,)), ((), ())),
                         precision=prec, preferred_element_type=jnp.float32)
    p2 = lax.dot_general(m2_rows, m1_full, (((1,), (1,)), ((), ())),
                         precision=prec, preferred_element_type=jnp.float32)
    adaptive = jnp.maximum(jnp.tanh(a_ref[0] * (p1 - p2)), jnp.float32(0.0))

    out_ref[...] = (adaptive * a_base).astype(out_ref.dtype)


# --------------------------------- wrapper ----------------------------------

def light_dgc(x, e1, e2, theta1, theta2, a, *, top_k, alpha=0.2,
              tile_t=None, tile_n=128, target_block_bytes=2 * 1024 * 1024):
    """x: [B,T,N,D] float32. Returns A_dynamic [N,N] float32."""
    _, t, n, d = x.shape

    # lane-dense padding of N (every [N,N] intermediate and the output store)
    n_pad = max(128, ((n + 127) // 128) * 128)

    # ---- kernel 1: stream batch 0 of X and compute the time mean ----
    # Repack to lane-dense [T, (N_pad*D)//128, 128] when possible: with D < 128
    # the unpacked layout wastes most of every vld/vadd during the dominant
    # streaming phase.
    if (n_pad * d) % 128 == 0:
        rows_p, cols_p = (n_pad * d) // 128, 128
    else:
        rows_p, cols_p = n_pad, d
    bytes_per_t = rows_p * cols_p * 4

    if tile_t is None:
        tile_t = max(1, target_block_bytes // bytes_per_t)      # ~2 MiB X blocks
    tile_t = max(1, min(int(tile_t), t))
    t_pad = ((t + tile_t - 1) // tile_t) * tile_t

    # TODO(synk): casting X to bfloat16 here would halve HBM traffic (biggest
    # win on v5e) if the model tolerates it; accumulation is already f32.
    x0 = jnp.pad(x[0].astype(jnp.float32),
                 ((0, t_pad - t), (0, n_pad - n), (0, 0)))
    x0p = x0.reshape(t_pad, rows_p, cols_p)

    vmem1 = int(min(max(2 * tile_t * bytes_per_t + 6 * bytes_per_t + (4 << 20),
                        16 << 20), 56 << 20))
    mean_packed = pl.pallas_call(
        functools.partial(time_mean_kernel, inv_t=1.0 / float(t)),
        out_shape=jax.ShapeDtypeStruct((rows_p, cols_p), jnp.float32),
        grid_spec=pltpu.PrefetchScalarGridSpec(
            num_scalar_prefetch=0,
            grid=(t_pad // tile_t,),
            in_specs=[pl.BlockSpec((tile_t, rows_p, cols_p),
                                   lambda ti: (ti, 0, 0))],
            out_specs=pl.BlockSpec((rows_p, cols_p), lambda ti: (0, 0)),
            scratch_shapes=[pltpu.VMEM((rows_p, cols_p), jnp.float32)],
        ),
        compiler_params=pltpu.CompilerParams(
            dimension_semantics=("arbitrary",),        # T is a reduction axis
            vmem_limit_bytes=vmem1,
        ),
    )(x0p)
    x_mean = mean_packed.reshape(n_pad, d)             # undo the packing (tiny)

    # ---- kernel 2: per-row-tile graph construction (parallel over tiles) ----
    tile_n = min(int(tile_n), n_pad)
    if n_pad % tile_n != 0:
        tile_n = 128                                   # n_pad is a multiple of 128
    e1p = jnp.pad(e1.astype(jnp.float32), ((0, n_pad - n), (0, 0)))
    e2p = jnp.pad(e2.astype(jnp.float32), ((0, n_pad - n), (0, 0)))
    a_arr = jnp.asarray(a, jnp.float32).reshape(1)

    vmem2 = int(min(max(12 * tile_n * n_pad * 4 + 8 * n_pad * d * 4 + (4 << 20),
                        16 << 20), 56 << 20))
    out = pl.pallas_call(
        functools.partial(dgc_epilogue_kernel, alpha=float(alpha),
                          top_k=int(top_k), n_real=int(n)),
        out_shape=jax.ShapeDtypeStruct((n_pad, n_pad), jnp.float32),
        grid_spec=pltpu.PrefetchScalarGridSpec(
            num_scalar_prefetch=0,
            grid=(n_pad // tile_n,),
            in_specs=[
                pl.BlockSpec((n_pad, d), lambda i: (0, 0)),         # time mean
                pl.BlockSpec((n_pad, d), lambda i: (0, 0)),         # E1
                pl.BlockSpec((n_pad, d), lambda i: (0, 0)),         # E2
                pl.BlockSpec((d, d), lambda i: (0, 0)),             # theta1
                pl.BlockSpec((d, d), lambda i: (0, 0)),             # theta2
                pl.BlockSpec(memory_space=pltpu.MemorySpace.SMEM),  # a (scalar)
            ],
            out_specs=pl.BlockSpec((tile_n, n_pad), lambda i: (i, 0)),
        ),
        compiler_params=pltpu.CompilerParams(
            dimension_semantics=("parallel",),   # row tiles -> both TCs on v7x
            vmem_limit_bytes=vmem2,
        ),
    )(x_mean, e1p, e2p, theta1, theta2, a_arr)
    return out[:n, :n]


# ------------------------------- reference ----------------------------------

def light_dgc_ref(x, e1, e2, theta1, theta2, a, *, top_k, alpha=0.2):
    """Pure-JAX reference matching the PyTorch forward."""
    x0 = x[0].mean(axis=0)
    xn = x0 / jnp.maximum(jnp.linalg.norm(x0, axis=1, keepdims=True), 1e-12)
    sim = jnp.dot(xn, xn.T, precision=lax.Precision.HIGHEST)
    n = sim.shape[0]
    sim = sim * (1.0 - jnp.eye(n, dtype=sim.dtype))
    vals, idx = lax.top_k(sim, top_k)
    a_base = jnp.zeros_like(sim).at[jnp.arange(n)[:, None], idx].set(vals)
    m1 = jnp.tanh(alpha * jnp.dot(e1, theta1, precision=lax.Precision.HIGHEST))
    m2 = jnp.tanh(alpha * jnp.dot(e2, theta2, precision=lax.Precision.HIGHEST))
    diff = (jnp.dot(m1, m2.T, precision=lax.Precision.HIGHEST)
            - jnp.dot(m2, m1.T, precision=lax.Precision.HIGHEST))
    adaptive = jax.nn.relu(jnp.tanh(a[0] * diff))
    return adaptive * a_base


if __name__ == "__main__":
    key = jax.random.PRNGKey(0)
    B, T, N, D = 2, 8, 16, 32
    TOP_K, ALPHA = 4, 0.2

    k1, k2, k3, k4, k5 = jax.random.split(key, 5)
    x = jax.random.normal(k1, (B, T, N, D), dtype=jnp.float32)
    e1 = jax.random.normal(k2, (N, D), dtype=jnp.float32)
    e2 = jax.random.normal(k3, (N, D), dtype=jnp.float32)
    theta1 = jax.random.normal(k4, (D, D), dtype=jnp.float32)
    theta2 = jax.random.normal(k5, (D, D), dtype=jnp.float32)
    a = jnp.ones((1,), dtype=jnp.float32)   # nn.Parameter(torch.tensor(1.0))

    out = light_dgc(x, e1, e2, theta1, theta2, a, top_k=TOP_K, alpha=ALPHA)
    jax.block_until_ready(out)

    ref = light_dgc_ref(x, e1, e2, theta1, theta2, a, top_k=TOP_K, alpha=ALPHA)
    assert out.shape == (N, N)
    err = float(jnp.max(jnp.abs(out - ref)))
    assert jnp.allclose(out, ref, atol=1e-3, rtol=1e-3), err

    print("KERNEL_OK")
</pallas_src>

<mosaic_0001>
module attributes {stable_mosaic.version = 11 : i64} {
  func.func @time_mean_kernel(%arg0: i32, %arg1: memref<8x32x128xf32, #tpu.memory_space<vmem>>, %arg2: memref<32x128xf32, #tpu.memory_space<vmem>>, %arg3: memref<32x128xf32, #tpu.memory_space<vmem>>) attributes {dimension_semantics = [#tpu.dimension_semantics<arbitrary>], iteration_bounds = array<i64: 1>, scalar_prefetch = 0 : i64, scratch_operands = 1 : i64, tpu.core_type = #tpu.core_type<tc>, window_params = [{transform_indices = @transform_0, window_bounds = array<i64: 8, 32, 128>}, {pipeline_mode = #tpu.pipeline_mode<synchronous>, transform_indices = @transform_1, window_bounds = array<i64: 32, 128>}]} {
    %c0_i32 = arith.constant 0 : i32
    %0 = arith.cmpi eq, %arg0, %c0_i32 : i32
    %1 = arith.extui %0 : i1 to i32
    %c0_i32_0 = arith.constant 0 : i32
    %2 = arith.cmpi ne, %1, %c0_i32_0 : i32
    scf.if %2 {
      %cst_9 = arith.constant 0.000000e+00 : f32
      %11 = vector.broadcast %cst_9 : f32 to vector<32x128xf32>
      %c0_10 = arith.constant 0 : index
      %c0_11 = arith.constant 0 : index
      %12 = vector.load %arg3[%c0_10, %c0_11] : memref<32x128xf32, #tpu.memory_space<vmem>>, vector<32x128xf32>
      tpu.vector_store %arg3[%c0_10, %c0_11], %11 {strides = array<i32>} : memref<32x128xf32, #tpu.memory_space<vmem>>, vector<32x128xf32>,
    } else {
    }
    %c0 = arith.constant 0 : index
    %c0_1 = arith.constant 0 : index
    %3 = vector.load %arg3[%c0, %c0_1] : memref<32x128xf32, #tpu.memory_space<vmem>>, vector<32x128xf32>
    %c0_2 = arith.constant 0 : index
    %c0_3 = arith.constant 0 : index
    %c0_4 = arith.constant 0 : index
    %4 = vector.load %arg1[%c0_2, %c0_3, %c0_4] : memref<8x32x128xf32, #tpu.memory_space<vmem>>, vector<8x32x128xf32>
    %cst = arith.constant dense<0.000000e+00> : vector<32x128xf32>
    %5 = vector.multi_reduction <add>, %4, %cst [0] : vector<8x32x128xf32> to vector<32x128xf32>
    %6 = arith.addf %3, %5 : vector<32x128xf32>
    %c0_5 = arith.constant 0 : index
    %c0_6 = arith.constant 0 : index
    %7 = vector.load %arg3[%c0_5, %c0_6] : memref<32x128xf32, #tpu.memory_space<vmem>>, vector<32x128xf32>
    tpu.vector_store %arg3[%c0_5, %c0_6], %6 {strides = array<i32>} : memref<32x128xf32, #tpu.memory_space<vmem>>, vector<32x128xf32>,
    %c0_i32_7 = arith.constant 0 : i32
    %8 = arith.cmpi eq, %arg0, %c0_i32_7 : i32
    %9 = arith.extui %8 : i1 to i32
    %c0_i32_8 = arith.constant 0 : i32
    %10 = arith.cmpi ne, %9, %c0_i32_8 : i32
    scf.if %10 {
      %c0_9 = arith.constant 0 : index
      %c0_10 = arith.constant 0 : index
      %11 = vector.load %arg3[%c0_9, %c0_10] : memref<32x128xf32, #tpu.memory_space<vmem>>, vector<32x128xf32>
      %cst_11 = arith.constant 1.250000e-01 : f32
      %12 = vector.broadcast %cst_11 : f32 to vector<32x128xf32>
      %13 = arith.mulf %11, %12 : vector<32x128xf32>
      %c0_12 = arith.constant 0 : index
      %c0_13 = arith.constant 0 : index
      %14 = vector.load %arg2[%c0_12, %c0_13] : memref<32x128xf32, #tpu.memory_space<vmem>>, vector<32x128xf32>
      tpu.vector_store %arg2[%c0_12, %c0_13], %13 {strides = array<i32>} : memref<32x128xf32, #tpu.memory_space<vmem>>, vector<32x128xf32>,
    } else {
    }
    return
  }
  func.func @transform_0(%arg0: i32) -> (i32, i32, i32) {
    %c0_i32 = arith.constant 0 : i32
    %c0_i32_0 = arith.constant 0 : i32
    %c0_i32_1 = arith.constant 0 : i32
    return %arg0, %c0_i32, %c0_i32_0 : i32, i32, i32
  }
  func.func @transform_1(%arg0: i32) -> (i32, i32) {
    %c0_i32 = arith.constant 0 : i32
    %c0_i32_0 = arith.constant 0 : i32
    %c0_i32_1 = arith.constant 0 : i32
    return %c0_i32, %c0_i32_0 : i32, i32
  }
}

</mosaic_0001>

<llo_original>
// kernel: tpu_custom_call.1
$region0: #{tpu_custom_call.1}
  #allocation0 [shape = 'u32[]', space=smem, size = 0x4, offset = 0x4, fixed_abs, tag = 'smem constant byte address 0x4 - core index']
  #allocation1 [shape = 'u32[144,128]{1,0:T(1,128)}', space=vmem, size = 0x12000, scoped, tag = 'internal scratch']
  #allocation2 [shape = 'f32[32,128]{1,0:T(8,128)}', space=vmem, size = 0x4000, scoped, tag = 'scratch operand']
  %s0 = inlined_call_operand.hbm [shape: f32[8,32,128], index: 0, kind: input, shape index: {}]
  %s1 = inlined_call_operand.hbm [shape: f32[32,128], index: 1, kind: output, shape index: {}]
  %s2 = sld [smem:[#allocation0]]
  $region26: #{tpu_custom_call.1} parent=0
    _
  %s4 = ssub.s32 1, %s2
  %s5 = scalar_select 0, %s4, %s2
  $region1: #{tpu_custom_call.1} parent=0
    #allocation3 [shape = 'u8[131072]{0}', space=vmem, size = 0x20000, scoped, tag = 'input window, operand 0, single buffered']
    #allocation4 [shape = 's32[1]{0}', space=sflag, size = 0x4, scoped, tag = 'scoped memory for tpu_custom_call.1']
    #allocation5 [shape = 's32[1]{0}', space=sflag, size = 0x4, scoped, tag = 'scoped memory for tpu_custom_call.1']
    #allocation6 [shape = 'u8[16384]{0}', space=vmem, size = 0x4000, scoped, tag = 'output window, operand 0, single buffered']
    %6 = vsyncpa [#allocation4], 0
    %7 = vsyncpa [#allocation5], 0
    // Predicated region
    $region2: #{tpu_custom_call.1} parent=1 // pred_check
      _
    $region3: #{tpu_custom_call.1} parent=1 // pred_check_branch
      %9 = sbr.rel (0) target = $region5
    $region4: #{tpu_custom_call.1} parent=1 // pred_region
      %s11 = ssub.s32 4096, 4096
      %12 = vsyncadd [#allocation4], %s11
      %s13 = sshll.u32 [#allocation3], 4
      %s14 = int_to_ptr.vmem [resolvable:$true] %s13
      %19 = dma.hbm_to_vmem [thread:$0]  %s0, 4096, %s14, [#allocation4], 128, 128, 8
    $region5: #{tpu_custom_call.1} parent=1 // pred_fallthru
      _
    // Predicated region
    $region6: #{tpu_custom_call.1} parent=1 // pred_check
      _
    $region7: #{tpu_custom_call.1} parent=1 // pred_check_branch
      %21 = sbr.rel (0) target = $region9
    $region8: #{tpu_custom_call.1} parent=1 // pred_region
      %22 = dma.done [#allocation4], 4096
    $region9: #{tpu_custom_call.1} parent=1 // pred_fallthru
      _
    %p23 = scmp.eq.s32.totalorder 0, 0
    // Predicated region
    $region10: #{tpu_custom_call.1} parent=1 // pred_check
      %p24 = pneg %p23
    $region11: #{tpu_custom_call.1} parent=1 // pred_check_branch
      %26 = sbr.rel (%p24) target = $region13
    $region12: #{tpu_custom_call.1} parent=1 // pred_region
      %27 = vst [vmem:[#allocation2] sm:$0xff] 0.0
      %28 = vst [vmem:[#allocation2 + $0x8] sm:$0xff] 0.0
      %29 = vst [vmem:[#allocation2 + $0x10] sm:$0xff] 0.0
      %30 = vst [vmem:[#allocation2 + $0x18] sm:$0xff] 0.0
    $region13: #{tpu_custom_call.1} parent=1 // pred_fallthru
      _
    %v31 = vld [vmem:[#allocation2] sm:$0xff]
    %v32 = vld [vmem:[#allocation2 + $0x8] sm:$0xff]
    %v33 = vld [vmem:[#allocation2 + $0x10] sm:$0xff]
    %v34 = vld [vmem:[#allocation2 + $0x18] sm:$0xff]
    %v35 = vld [vmem:[#allocation3] sm:$0xff]
    %v36 = vld [vmem:[#allocation3 + $0x8] sm:$0xff]
    %v37 = vld [vmem:[#allocation3 + $0x10] sm:$0xff]
    %v38 = vld [vmem:[#allocation3 + $0x18] sm:$0xff]
    %v39 = vld [vmem:[#allocation3 + $0x20] sm:$0xff]
    %v40 = vld [vmem:[#allocation3 + $0x28] sm:$0xff]
    %v41 = vld [vmem:[#allocation3 + $0x30] sm:$0xff]
    %v42 = vld [vmem:[#allocation3 + $0x38] sm:$0xff]
    %v43 = vld [vmem:[#allocation3 + $0x40] sm:$0xff]
    %v44 = vld [vmem:[#allocation3 + $0x48] sm:$0xff]
    %v45 = vld [vmem:[#allocation3 + $0x50] sm:$0xff]
    %v46 = vld [vmem:[#allocation3 + $0x58] sm:$0xff]
    %v47 = vld [vmem:[#allocation3 + $0x60] sm:$0xff]
    %v48 = vld [vmem:[#allocation3 + $0x68] sm:$0xff]
    %v49 = vld [vmem:[#allocation3 + $0x70] sm:$0xff]
    %v50 = vld [vmem:[#allocation3 + $0x78] sm:$0xff]
    %v51 = vld [vmem:[#allocation3 + $0x80] sm:$0xff]
    %v52 = vld [vmem:[#allocation3 + $0x88] sm:$0xff]
    %v53 = vld [vmem:[#allocation3 + $0x90] sm:$0xff]
    %v54 = vld [vmem:[#allocation3 + $0x98] sm:$0xff]
    %v55 = vld [vmem:[#allocation3 + $0xa0] sm:$0xff]
    %v56 = vld [vmem:[#allocation3 + $0xa8] sm:$0xff]
    %v57 = vld [vmem:[#allocation3 + $0xb0] sm:$0xff]
    %v58 = vld [vmem:[#allocation3 + $0xb8] sm:$0xff]
    %v59 = vld [vmem:[#allocation3 + $0xc0] sm:$0xff]
    %v60 = vld [vmem:[#allocation3 + $0xc8] sm:$0xff]
    %v61 = vld [vmem:[#allocation3 + $0xd0] sm:$0xff]
    %v62 = vld [vmem:[#allocation3 + $0xd8] sm:$0xff]
    %v63 = vld [vmem:[#allocation3 + $0xe0] sm:$0xff]
    %v64 = vld [vmem:[#allocation3 + $0xe8] sm:$0xff]
    %v65 = vld [vmem:[#allocation3 + $0xf0] sm:$0xff]
    %v66 = vld [vmem:[#allocation3 + $0xf8] sm:$0xff]
    %v67 = vadd.f32 %v35, %v39
    %v68 = vadd.f32 %v67, %v43
    %v69 = vadd.f32 %v68, %v47
    %v70 = vadd.f32 %v69, %v51
    %v71 = vadd.f32 %v70, %v55
    %v72 = vadd.f32 %v71, %v59
    %v73 = vadd.f32 %v72, %v63
    %v74 = vadd.f32 %v36, %v40
    %v75 = vadd.f32 %v74, %v44
    %v76 = vadd.f32 %v75, %v48
    %v77 = vadd.f32 %v76, %v52
    %v78 = vadd.f32 %v77, %v56
    %v79 = vadd.f32 %v78, %v60
    %v80 = vadd.f32 %v79, %v64
    %v81 = vadd.f32 %v37, %v41
    %v82 = vadd.f32 %v81, %v45
    %v83 = vadd.f32 %v82, %v49
    %v84 = vadd.f32 %v83, %v53
    %v85 = vadd.f32 %v84, %v57
    %v86 = vadd.f32 %v85, %v61
    %v87 = vadd.f32 %v86, %v65
    %v88 = vadd.f32 %v38, %v42
    %v89 = vadd.f32 %v88, %v46
    %v90 = vadd.f32 %v89, %v50
    %v91 = vadd.f32 %v90, %v54
    %v92 = vadd.f32 %v91, %v58
    %v93 = vadd.f32 %v92, %v62
    %v94 = vadd.f32 %v93, %v66
    %v95 = vadd.f32 %v31, %v73
    %v96 = vadd.f32 %v32, %v80
    %v97 = vadd.f32 %v33, %v87
    %v98 = vadd.f32 %v34, %v94
    %99 = vst [vmem:[#allocation2] sm:$0xff] %v95
    %100 = vst [vmem:[#allocation2 + $0x8] sm:$0xff] %v96
    %101 = vst [vmem:[#allocation2 + $0x10] sm:$0xff] %v97
    %102 = vst [vmem:[#allocation2 + $0x18] sm:$0xff] %v98
    // Predicated region
    $region14: #{tpu_custom_call.1} parent=1 // pred_check
      %p103 = pneg %p23
    $region15: #{tpu_custom_call.1} parent=1 // pred_check_branch
      %105 = sbr.rel (%p103) target = $region17
    $region16: #{tpu_custom_call.1} parent=1 // pred_region
      %v106 = vld [vmem:[#allocation2] sm:$0xff]
      %v107 = vld [vmem:[#allocation2 + $0x8] sm:$0xff]
      %v108 = vld [vmem:[#allocation2 + $0x10] sm:$0xff]
      %v109 = vld [vmem:[#allocation2 + $0x18] sm:$0xff]
      %v110 = vmul.f32 %v106, 0.125
      %v111 = vmul.f32 %v107, 0.125
      %v112 = vmul.f32 %v108, 0.125
      %v113 = vmul.f32 %v109, 0.125
      %114 = vst [vmem:[#allocation6] sm:$0xff] %v110
      %115 = vst [vmem:[#allocation6 + $0x8] sm:$0xff] %v111
      %116 = vst [vmem:[#allocation6 + $0x10] sm:$0xff] %v112
      %117 = vst [vmem:[#allocation6 + $0x18] sm:$0xff] %v113
    $region17: #{tpu_custom_call.1} parent=1 // pred_fallthru
      _
    // Predicated region
    $region18: #{tpu_custom_call.1} parent=1 // pred_check
      _
    $region19: #{tpu_custom_call.1} parent=1 // pred_check_branch
      %119 = sbr.rel (0) target = $region21
    $region20: #{tpu_custom_call.1} parent=1 // pred_region
      %s121 = ssub.s32 512, 512
      %122 = vsyncadd [#allocation5], %s121
      %s123 = sshll.u32 [#allocation6], 4
      %s124 = int_to_ptr.vmem [resolvable:$true] %s123
      %129 = dma.vmem_to_hbm [thread:$0]  %s124, 512, %s1, [#allocation5], 128, 128, 8
    $region21: #{tpu_custom_call.1} parent=1 // pred_fallthru
      _
    // Predicated region
    $region22: #{tpu_custom_call.1} parent=1 // pred_check
      _
    $region23: #{tpu_custom_call.1} parent=1 // pred_check_branch
      %131 = sbr.rel (0) target = $region25
    $region24: #{tpu_custom_call.1} parent=1 // pred_region
      %132 = dma.done [#allocation5], 512
    $region25: #{tpu_custom_call.1} parent=1 // pred_fallthru
      _
    %133 = vsyncpa [#allocation4], 1
    %134 = vsyncpa [#allocation5], 1

</llo_original>
